<compile_context>
chip_gen: v7x
topology: tpu7x:2x2x1
jax: 0.10.0
libtpu: 0.0.40
codegen_flags: <defaults>
</compile_context>

<pallas_src>
import functools
import math

import jax
import jax.numpy as jnp
from jax.experimental import pallas as pl
from jax.experimental.pallas import tpu as pltpu


def _round_up(x, m):
    return ((x + m - 1) // m) * m


def _cdiv(a, b):
    return -(-a // b)


def _swept_volume_kernel(x_ref, w_ref, bma_ref, out_ref, acc_ref):
    """One (tm, tn) output tile of tanh(x @ W' + b') * m' + a'.

    x_ref:   (tm, tk) f32 feature tile (cast to bf16 in-register for the MXU)
    w_ref:   (tk, tn) bf16 pre-scaled weight tile (W' = 0.5*W)
    bma_ref: (8,  tn) f32; row0 = 0.5*b, row1 = 0.5*m, row2 = 0.5*m + a
    out_ref: (tm, tn) f32
    acc_ref: (tm, tn) f32 accumulator, persists across the K grid axis
    """
    k = pl.program_id(2)

    @pl.when(k == 0)
    def _():
        # Fold the bias add into the accumulator init (saves one VPU pass).
        acc_ref[...] = jnp.broadcast_to(bma_ref[0:1, :], acc_ref.shape)

    acc_ref[...] += jnp.dot(x_ref[...].astype(jnp.bfloat16), w_ref[...],
                            preferred_element_type=jnp.float32)

    @pl.when(k == pl.num_programs(2) - 1)
    def _():
        t = jnp.tanh(acc_ref[...])                       # single EUP push
        out_ref[...] = (t * bma_ref[1:2, :] + bma_ref[2:3, :]).astype(out_ref.dtype)


def prepare_swept_volume_params(weight_t, bias, shapes_multiplier, shapes_adder):
    """One-time parameter prep — do NOT call per forward step.

    Returns:
      w_prepped: (K_pad, N_pad) bf16, lane-aligned, pre-scaled by 0.5
      bma:       (8, N_pad) f32; row0=0.5*b, row1=0.5*mult, row2=0.5*mult+add
    """
    K, N = weight_t.shape
    K_pad = _round_up(K, 128)
    N_pad = _round_up(N, 128)

    w_half = 0.5 * weight_t.astype(jnp.float32)           # exact (power of two)
    w_prepped = jnp.pad(
        w_half, ((0, K_pad - K), (0, N_pad - N))).astype(jnp.bfloat16)

    half_mult = 0.5 * shapes_multiplier.reshape(-1).astype(jnp.float32)
    bma = jnp.zeros((8, N_pad), jnp.float32)
    bma = bma.at[0, :N].set(0.5 * bias.reshape(-1).astype(jnp.float32))
    bma = bma.at[1, :N].set(half_mult)
    bma = bma.at[2, :N].set(half_mult + shapes_adder.reshape(-1).astype(jnp.float32))
    return w_prepped, bma


@functools.partial(jax.jit, static_argnames=("num_primitives", "num_params"))
def swept_volume_head(feature, w_prepped, bma, *, num_primitives, num_params):
    """Pallas-backed forward pass of SweptVolumeHead.

    feature:   (B, K) f32 activations (K = feature_dim * 8)
    w_prepped: (K_pad, N_pad) bf16 from prepare_swept_volume_params
    bma:       (8, N_pad) f32 from prepare_swept_volume_params
    returns:   (B, num_primitives, num_params) f32
    """
    B, K = feature.shape
    K_pad, N_pad = w_prepped.shape
    N = num_primitives * num_params
    assert N <= N_pad and K <= K_pad

    # ---- tile plan -----------------------------------------------------------
    # Rows per tile: multiple of 16 (bf16 sublane packing), <= 256.
    if B <= 256:
        tm = _round_up(max(B, 1), 16)
    else:
        tm = _round_up(_cdiv(B, _cdiv(B, 256)), 16)
    B_pad = _round_up(B, tm)

    # Columns per tile: multiple-of-128 divisor of N_pad (no re-rounding of
    # N_pad), <= 512; prefer >= 2 column tiles so both v7x cores get work.
    tn_divs = [d for d in range(128, min(512, N_pad) + 1, 128) if N_pad % d == 0]
    tn = tn_divs[-1]
    if N_pad // tn < 2:
        multi = [d for d in tn_divs if N_pad // d >= 2]
        if multi:
            tn = multi[-1]

    # K depth per step: largest of these dividing K_pad. Bounds VMEM footprint
    # (~10 MiB worst case) independent of K.
    tk = next(t for t in (2048, 1024, 512, 256, 128) if K_pad % t == 0)

    grid = (N_pad // tn, B_pad // tm, K_pad // tk)

    # ---- activation padding only when required -------------------------------
    x = feature
    if (B_pad, K_pad) != (B, K):
        # K tail must be zero-padded so the contraction is unaffected.
        x = jnp.pad(x, ((0, B_pad - B), (0, K_pad - K)))

    cost = pl.CostEstimate(
        flops=2 * B_pad * K_pad * N_pad,
        transcendentals=B_pad * N_pad,
        bytes_accessed=(B_pad * K_pad * 4 + K_pad * N_pad * 2
                        + 8 * N_pad * 4 + B_pad * N_pad * 4),
    )

    out = pl.pallas_call(
        _swept_volume_kernel,
        out_shape=jax.ShapeDtypeStruct((B_pad, N_pad), jnp.float32),
        grid=grid,
        in_specs=[
            pl.BlockSpec((tm, tk), lambda j, i, k: (i, k)),   # x (f32)
            pl.BlockSpec((tk, tn), lambda j, i, k: (k, j)),   # W' (bf16); resident
                                                              # over i when K fits
            pl.BlockSpec((8, tn), lambda j, i, k: (0, j)),    # b'/m'/a'
        ],
        out_specs=pl.BlockSpec((tm, tn), lambda j, i, k: (i, j)),
        scratch_shapes=[pltpu.VMEM((tm, tn), jnp.float32)],
        compiler_params=pltpu.CompilerParams(
            dimension_semantics=("parallel", "parallel", "arbitrary")),
        cost_estimate=cost,
    )(x, w_prepped, bma)

    return out[:B, :N].reshape(B, num_primitives, num_params)


def make_params(key, feature_dim, num_primitives, bspline_control_points):
    """Deterministic parameter construction mirroring SweptVolumeHead.__init__."""
    num_params = bspline_control_points * 3 + 3 + 2
    in_features = feature_dim * 8
    out_features = num_primitives * num_params

    # Xavier-uniform (torch stores (out, in); we keep (in, out) for x @ W).
    bound = math.sqrt(6.0 / (in_features + out_features))
    weight_t = jax.random.uniform(
        key, (in_features, out_features), dtype=jnp.float32,
        minval=-bound, maxval=bound)
    bias = jnp.zeros((out_features,), dtype=jnp.float32)

    c3 = bspline_control_points * 3
    adder = jnp.zeros((1, num_primitives, num_params), dtype=jnp.float32)
    adder = adder.at[:, :, :c3].set(-0.5)
    adder = adder.at[:, :, c3 + 3:].set(-0.5)
    adder = adder.at[:, :, c3:c3 + 2].set(0.01)
    adder = adder.at[:, :, c3 + 2].set(0.5)

    mult = jnp.ones((1, num_primitives, num_params), dtype=jnp.float32)
    mult = mult.at[:, :, c3:c3 + 2].set(0.49)
    mult = mult.at[:, :, c3 + 2].set(4.5)

    return weight_t, bias, mult, adder, num_params


def reference_forward(feature, weight_t, bias, mult, adder,
                      num_primitives, num_params, matmul_dtype=jnp.float32):
    """Pure-JAX reference of the PyTorch forward (optionally bf16 matmul)."""
    x = feature.astype(matmul_dtype)
    w = weight_t.astype(matmul_dtype)
    shapes = jnp.dot(x, w, preferred_element_type=jnp.float32) + bias
    shapes = jax.nn.sigmoid(shapes)
    shapes = shapes.reshape(-1, num_primitives, num_params)
    return shapes * mult + adder


if __name__ == "__main__":
    # Small, deterministic configuration.
    feature_dim = 32              # -> in_features = 256
    num_primitives = 8
    bspline_control_points = 4    # -> num_params = 17, N = 136
    batch = 8

    key = jax.random.PRNGKey(0)
    k_w, k_x = jax.random.split(key)

    weight_t, bias, mult, adder, num_params = make_params(
        k_w, feature_dim, num_primitives, bspline_control_points)

    feature = jax.random.normal(
        k_x, (batch, feature_dim * 8), dtype=jnp.float32)

    # One-time prep (padded bf16 weight + folded constants).  The per-call
    # path only touches the f32 activations.
    w_prepped, bma = jax.block_until_ready(
        prepare_swept_volume_params(weight_t, bias, mult, adder))

    out = swept_volume_head(
        feature, w_prepped, bma,
        num_primitives=num_primitives, num_params=num_params)
    out = jax.block_until_ready(out)

    # Reference with the same bf16 matmul operands (f32 accumulation).
    # TODO(synk): if bit-level f32 parity with the PyTorch head is required,
    # add an f32-operand matmul variant instead of the bf16 MXU path.
    ref = reference_forward(
        feature, weight_t, bias, mult, adder, num_primitives, num_params,
        matmul_dtype=jnp.bfloat16)
    ref = jax.block_until_ready(ref)

    # Full-f32 reference for a coarse sanity bound on the bf16 operand cast.
    ref_f32 = reference_forward(
        feature, weight_t, bias, mult, adder, num_primitives, num_params)
    ref_f32 = jax.block_until_ready(ref_f32)

    assert out.shape == (batch, num_primitives, num_params), out.shape
    assert jnp.allclose(out, ref, atol=2e-4, rtol=2e-4), (
        float(jnp.max(jnp.abs(out - ref))))
    assert jnp.allclose(out, ref_f32, atol=5e-2, rtol=5e-2), (
        float(jnp.max(jnp.abs(out - ref_f32))))

    print("KERNEL_OK")
</pallas_src>

<mosaic_0001>
module attributes {stable_mosaic.version = 11 : i64} {
  func.func @_swept_volume_kernel(%arg0: i32, %arg1: i32, %arg2: i32, %arg3: memref<16x256xf32, #tpu.memory_space<vmem>>, %arg4: memref<256x128xbf16, #tpu.memory_space<vmem>>, %arg5: memref<8x128xf32, #tpu.memory_space<vmem>>, %arg6: memref<16x128xf32, #tpu.memory_space<vmem>>, %arg7: memref<16x128xf32, #tpu.memory_space<vmem>>) attributes {dimension_semantics = [#tpu.dimension_semantics<parallel>, #tpu.dimension_semantics<parallel>, #tpu.dimension_semantics<arbitrary>], iteration_bounds = array<i64: 2, 1, 1>, scalar_prefetch = 0 : i64, scratch_operands = 1 : i64, tpu.core_type = #tpu.core_type<tc>, window_params = [{transform_indices = @transform_0, window_bounds = array<i64: 16, 256>}, {transform_indices = @transform_1, window_bounds = array<i64: 256, 128>}, {transform_indices = @transform_2, window_bounds = array<i64: 8, 128>}, {transform_indices = @transform_3, window_bounds = array<i64: 16, 128>}]} {
    %c0_i32 = arith.constant 0 : i32
    %0 = arith.cmpi eq, %arg2, %c0_i32 : i32
    %1 = arith.extui %0 : i1 to i32
    %c0_i32_0 = arith.constant 0 : i32
    %2 = arith.cmpi ne, %1, %c0_i32_0 : i32
    scf.if %2 {
      %c0_10 = arith.constant 0 : index
      %c0_11 = arith.constant 0 : index
      %13 = vector.load %arg5[%c0_10, %c0_11] : memref<8x128xf32, #tpu.memory_space<vmem>>, vector<1x128xf32>
      %14 = vector.shape_cast %13 : vector<1x128xf32> to vector<1x128xf32>
      %15 = vector.broadcast %14 : vector<1x128xf32> to vector<16x128xf32>
      %c0_12 = arith.constant 0 : index
      %c0_13 = arith.constant 0 : index
      %16 = vector.load %arg7[%c0_12, %c0_13] : memref<16x128xf32, #tpu.memory_space<vmem>>, vector<16x128xf32>
      tpu.vector_store %arg7[%c0_12, %c0_13], %15 {strides = array<i32>} : memref<16x128xf32, #tpu.memory_space<vmem>>, vector<16x128xf32>,
    } else {
    }
    %c0 = arith.constant 0 : index
    %c0_1 = arith.constant 0 : index
    %3 = vector.load %arg7[%c0, %c0_1] : memref<16x128xf32, #tpu.memory_space<vmem>>, vector<16x128xf32>
    %c0_2 = arith.constant 0 : index
    %c0_3 = arith.constant 0 : index
    %4 = vector.load %arg3[%c0_2, %c0_3] : memref<16x256xf32, #tpu.memory_space<vmem>>, vector<16x256xf32>
    %5 = arith.truncf %4 : vector<16x256xf32> to vector<16x256xbf16>
    %c0_4 = arith.constant 0 : index
    %c0_5 = arith.constant 0 : index
    %6 = vector.load %arg4[%c0_4, %c0_5] : memref<256x128xbf16, #tpu.memory_space<vmem>>, vector<256x128xbf16>
    %cst = arith.constant dense<0.000000e+00> : vector<16x128xf32>
    %7 = tpu.matmul %5, %6, %cst {dimension_numbers = #tpu.dot_dimension_numbers<[1], [0], [0], [1], [0, 0, 1, 1], [], []>} : vector<16x256xbf16>, vector<256x128xbf16>, vector<16x128xf32> -> vector<16x128xf32>
    %8 = arith.addf %3, %7 : vector<16x128xf32>
    %c0_6 = arith.constant 0 : index
    %c0_7 = arith.constant 0 : index
    %9 = vector.load %arg7[%c0_6, %c0_7] : memref<16x128xf32, #tpu.memory_space<vmem>>, vector<16x128xf32>
    tpu.vector_store %arg7[%c0_6, %c0_7], %8 {strides = array<i32>} : memref<16x128xf32, #tpu.memory_space<vmem>>, vector<16x128xf32>,
    %c0_i32_8 = arith.constant 0 : i32
    %10 = arith.cmpi eq, %arg2, %c0_i32_8 : i32
    %11 = arith.extui %10 : i1 to i32
    %c0_i32_9 = arith.constant 0 : i32
    %12 = arith.cmpi ne, %11, %c0_i32_9 : i32
    scf.if %12 {
      %c0_10 = arith.constant 0 : index
      %c0_11 = arith.constant 0 : index
      %13 = vector.load %arg7[%c0_10, %c0_11] : memref<16x128xf32, #tpu.memory_space<vmem>>, vector<16x128xf32>
      %14 = math.tanh %13 : vector<16x128xf32>
      %c1 = arith.constant 1 : index
      %c0_12 = arith.constant 0 : index
      %15 = vector.load %arg5[%c1, %c0_12] : memref<8x128xf32, #tpu.memory_space<vmem>>, vector<1x128xf32>
      %16 = vector.broadcast %15 : vector<1x128xf32> to vector<16x128xf32>
      %17 = arith.mulf %14, %16 : vector<16x128xf32>
      %c2 = arith.constant 2 : index
      %c0_13 = arith.constant 0 : index
      %18 = vector.load %arg5[%c2, %c0_13] : memref<8x128xf32, #tpu.memory_space<vmem>>, vector<1x128xf32>
      %19 = vector.broadcast %18 : vector<1x128xf32> to vector<16x128xf32>
      %20 = arith.addf %17, %19 : vector<16x128xf32>
      %c0_14 = arith.constant 0 : index
      %c0_15 = arith.constant 0 : index
      %21 = vector.load %arg6[%c0_14, %c0_15] : memref<16x128xf32, #tpu.memory_space<vmem>>, vector<16x128xf32>
      tpu.vector_store %arg6[%c0_14, %c0_15], %20 {strides = array<i32>} : memref<16x128xf32, #tpu.memory_space<vmem>>, vector<16x128xf32>,
    } else {
    }
    return
  }
  func.func @transform_0(%arg0: i32, %arg1: i32, %arg2: i32) -> (i32, i32) {
    %c0_i32 = arith.constant 0 : i32
    return %arg1, %arg2 : i32, i32
  }
  func.func @transform_1(%arg0: i32, %arg1: i32, %arg2: i32) -> (i32, i32) {
    %c0_i32 = arith.constant 0 : i32
    return %arg2, %arg0 : i32, i32
  }
  func.func @transform_2(%arg0: i32, %arg1: i32, %arg2: i32) -> (i32, i32) {
    %c0_i32 = arith.constant 0 : i32
    %c0_i32_0 = arith.constant 0 : i32
    return %c0_i32, %arg0 : i32, i32
  }
  func.func @transform_3(%arg0: i32, %arg1: i32, %arg2: i32) -> (i32, i32) {
    %c0_i32 = arith.constant 0 : i32
    return %arg1, %arg0 : i32, i32
  }
}

</mosaic_0001>

<llo_original>
// kernel: swept_volume_head.1
$region0: #{swept_volume_head.1}
  #allocation0 [shape = 'u32[]', space=smem, size = 0x4, offset = 0x4, fixed_abs, tag = 'smem constant byte address 0x4 - core index']
  #allocation1 [shape = 'u32[144,128]{1,0:T(1,128)}', space=vmem, size = 0x12000, scoped, tag = 'internal scratch']
  #allocation2 [shape = 'f32[16,128]{1,0:T(8,128)}', space=vmem, size = 0x2000, scoped, tag = 'scratch operand']
  %s0 = inlined_call_operand.vmem [shape: f32[16,256], index: 0, kind: input, shape index: {}]
  %s1 = inlined_call_operand.hbm [shape: bf16[256,256], index: 1, kind: input, shape index: {}]
  %s2 = inlined_call_operand.vmem [shape: f32[8,256], index: 2, kind: input, shape index: {}]
  %s3 = inlined_call_operand.vmem [shape: f32[16,256], index: 3, kind: output, shape index: {}]
  %s4 = sld [smem:[#allocation0]]
  $region91: #{swept_volume_head.1} parent=0
    _
  %s6 = ssub.s32 1, %s4
  %s7 = scalar_select 0, %s6, %s4
  $region1: #{swept_volume_head.1} parent=0
    #allocation3 [shape = 'u8[131072]{0}', space=vmem, size = 0x20000, scoped, tag = 'input window, operand 1']
    #allocation4 [shape = 's32[2]{0}', space=sflag, size = 0x8, scoped, tag = 'scoped memory for swept_volume_head.1']
    #allocation5 [shape = 'u8[16384]{0}', space=vmem, size = 0x4000, scoped, tag = 'output window, operand 0']
    %8 = vsyncpa [#allocation4], 0
    %s9 = scalar_lea.sflag [#allocation4], 1
    %10 = vsyncpa %s9, 0
    loop: start=0, step=1, limit=4
    $region2: #{swept_volume_head.1} parent=1 // loop_pre_header
      _
    $region3: #{swept_volume_head.1} parent=1 // loop_header
      %s12 = sphi 0, %s16
      %p13 = scmp.ge.s32.totalorder %s12, 4
      %s19 = sphi 0, %s38
      %s20 = sphi 0, %s34
      %s21 = sphi 0, %s30
      %s22 = sphi 0, %s19
      %s23 = sphi 0, %s20
      %s24 = sphi 0, %s21
      %s25 = sphi 0, %s22
      %s26 = sphi 0, %s23
      %s27 = sphi 0, %s24
      %s43 = sphi 0, %s45
      %s46 = sphi 0, %s43
      %s47 = sphi 0, %s46
      %s63 = sphi 0, %s47
      %s71 = sphi 0, %s73
      %s74 = sphi 0, %s71
      %s75 = sphi 0, %s74
      %s91 = sphi 0, %s75
      %s97 = sphi 0, %s99
      %s100 = sphi 0, %s97
      %s101 = sphi 0, %s100
      %s117 = sphi 0, %s101
      %s125 = sphi 0, %s127
      %s128 = sphi 0, %s125
      %s129 = sphi 0, %s128
      %s145 = sphi 0, %s129
    $region4: #{swept_volume_head.1} parent=1 // loop_header_branch
      %15 = sbr.rel (%p13) target = $region8
    $region5: #{swept_volume_head.1} parent=1 // loop_body
      %s17 = ssub.s32 %s12, 1
      %s18 = ssub.s32 %s12, 2
      %s28 = sadd.s32 1, %s21
      %p29 = scmp.ge.s32.totalorder %s28, 1
      %s30 = scalar_select %p29, 0, %s28
      %s31 = sadd.s32 1, %s20
      %s32 = scalar_select %p29, %s31, %s20
      %p33 = scmp.ge.s32.totalorder %s32, 1
      %s34 = scalar_select %p33, 0, %s32
      %s35 = sadd.s32 1, %s19
      %s36 = scalar_select %p33, %s35, %s19
      %p37 = scmp.ge.s32.totalorder %s36, 2
      %s38 = scalar_select %p37, 0, %s36
      %s39 = ssub.s32 %s20, %s34
      %s40 = ssub.s32 %s21, %s30
      %s41 = sor.u32 %s39, %s40
      %p42 = scmp.eq.s32.totalorder %s41, 0
      %s44 = sadd.s32 %s43, 1
      %s45 = scalar_select %p42, %s43, %s44
      %p48 = pneg %p42
      %p49 = scmp.eq.s32.totalorder %s12, 1
      %p50 = por %p48, %p49
      %p51 = scmp.ne.s32.totalorder %s43, %s46
      %p52 = scmp.eq.s32.totalorder %s12, 0
      %p53 = por %p51, %p52
      %p54 = scmp.ne.s32.totalorder %s43, %s46
      %p55 = scmp.eq.s32.totalorder %s17, 1
      %p56 = por %p54, %p55
      %p57 = scmp.ne.s32.totalorder %s46, %s47
      %p58 = scmp.eq.s32.totalorder %s17, 0
      %p59 = por %p57, %p58
      %p60 = scmp.ne.s32.totalorder %s46, %s47
      %p61 = scmp.eq.s32.totalorder %s18, 1
      %p62 = por %p60, %p61
      %p64 = scmp.ne.s32.totalorder %s47, %s63
      %p65 = scmp.eq.s32.totalorder %s18, 0
      %p66 = por %p64, %p65
      %s67 = ssub.s32 %s21, %s30
      %s68 = ssub.s32 %s19, %s38
      %s69 = sor.u32 %s67, %s68
      %p70 = scmp.eq.s32.totalorder %s69, 0
      %s72 = sadd.s32 %s71, 1
      %s73 = scalar_select %p70, %s71, %s72
      %p76 = pneg %p70
      %p77 = scmp.eq.s32.totalorder %s12, 1
      %p78 = por %p76, %p77
      %p79 = scmp.ne.s32.totalorder %s71, %s74
      %p80 = scmp.eq.s32.totalorder %s12, 0
      %p81 = por %p79, %p80
      %p82 = scmp.ne.s32.totalorder %s71, %s74
      %p83 = scmp.eq.s32.totalorder %s17, 1
      %p84 = por %p82, %p83
      %p85 = scmp.ne.s32.totalorder %s74, %s75
      %p86 = scmp.eq.s32.totalorder %s17, 0
      %p87 = por %p85, %p86
      %p88 = scmp.ne.s32.totalorder %s74, %s75
      %p89 = scmp.eq.s32.totalorder %s18, 1
      %p90 = por %p88, %p89
      %p92 = scmp.ne.s32.totalorder %s75, %s91
      %p93 = scmp.eq.s32.totalorder %s18, 0
      %p94 = por %p92, %p93
      %s95 = ssub.s32 %s19, %s38
      %p96 = scmp.eq.s32.totalorder %s95, 0
      %s98 = sadd.s32 %s97, 1
      %s99 = scalar_select %p96, %s97, %s98
      %p102 = pneg %p96
      %p103 = scmp.eq.s32.totalorder %s12, 1
      %p104 = por %p102, %p103
      %p105 = scmp.ne.s32.totalorder %s97, %s100
      %p106 = scmp.eq.s32.totalorder %s12, 0
      %p107 = por %p105, %p106
      %p108 = scmp.ne.s32.totalorder %s97, %s100
      %p109 = scmp.eq.s32.totalorder %s17, 1
      %p110 = por %p108, %p109
      %p111 = scmp.ne.s32.totalorder %s100, %s101
      %p112 = scmp.eq.s32.totalorder %s17, 0
      %p113 = por %p111, %p112
      %p114 = scmp.ne.s32.totalorder %s100, %s101
      %p115 = scmp.eq.s32.totalorder %s18, 1
      %p116 = por %p114, %p115
      %p118 = scmp.ne.s32.totalorder %s101, %s117
      %p119 = scmp.eq.s32.totalorder %s18, 0
      %p120 = por %p118, %p119
      %s121 = ssub.s32 %s20, %s34
      %s122 = ssub.s32 %s19, %s38
      %s123 = sor.u32 %s121, %s122
      %p124 = scmp.eq.s32.totalorder %s123, 0
      %s126 = sadd.s32 %s125, 1
      %s127 = scalar_select %p124, %s125, %s126
      %p130 = pneg %p124
      %p131 = scmp.eq.s32.totalorder %s12, 1
      %p132 = por %p130, %p131
      %p133 = scmp.ne.s32.totalorder %s125, %s128
      %p134 = scmp.eq.s32.totalorder %s12, 0
      %p135 = por %p133, %p134
      %p136 = scmp.ne.s32.totalorder %s125, %s128
      %p137 = scmp.eq.s32.totalorder %s17, 1
      %p138 = por %p136, %p137
      %p139 = scmp.ne.s32.totalorder %s128, %s129
      %p140 = scmp.eq.s32.totalorder %s17, 0
      %p141 = por %p139, %p140
      %p142 = scmp.ne.s32.totalorder %s128, %s129
      %p143 = scmp.eq.s32.totalorder %s18, 1
      %p144 = por %p142, %p143
      %p146 = scmp.ne.s32.totalorder %s129, %s145
      %p147 = scmp.eq.s32.totalorder %s18, 0
      %p148 = por %p146, %p147
      %p149 = scmp.le.s32.totalorder 1, %s12
      %p150 = scmp.lt.s32.totalorder %s12, 3
      %p151 = pnand %p149, %p150
      %p152 = pneg %p151
      // Predicated region
      $region9: #{swept_volume_head.1} parent=5 // pred_check
        _
      $region10: #{swept_volume_head.1} parent=5 // pred_check_branch
        %154 = sbr.rel (%p151) target = $region12
      $region11: #{swept_volume_head.1} parent=5 // pred_region
        %s155 = ssub.s32 %s12, 1
        // Predicated region
        $region13: #{swept_volume_head.1} parent=11 // pred_check
          %p156 = pneg %p59
        $region14: #{swept_volume_head.1} parent=11 // pred_check_branch
          %158 = sbr.rel (%p156) target = $region16
        $region15: #{swept_volume_head.1} parent=11 // pred_region
          %s159 = smul.u32 2, %s23
          %s160 = smul.u32 2, %s24
          %p161 = scmp.lt.s32.totalorder %s159, 1
          %s162 = scalar_select %p161, %s159, 1
          %p163 = scmp.lt.s32.totalorder %s160, 1
          %s164 = scalar_select %p163, %s160, 1
          %s165 = smul.addr %s162, 2
          %s166 = sadd.s32 %s164, %s165
          %s167 = smul.addr %s166, 8
          %s168 = scalar_lea.vmem %s0, %s167
          %s169 = smul.u32 2, %s23
          %s170 = smul.u32 2, %s24
        $region16: #{swept_volume_head.1} parent=11 // pred_fallthru
          _
      $region12: #{swept_volume_head.1} parent=5 // pred_fallthru
        _
      %p171 = scmp.lt.s32.totalorder %s12, 2
      // Predicated region
      $region17: #{swept_volume_head.1} parent=5 // pred_check
        %p172 = pneg %p171
      $region18: #{swept_volume_head.1} parent=5 // pred_check_branch
        %174 = sbr.rel (%p172) target = $region20
      $region19: #{swept_volume_head.1} parent=5 // pred_region
        // Predicated region
        $region21: #{swept_volume_head.1} parent=19 // pred_check
          %p175 = pneg %p81
        $region22: #{swept_volume_head.1} parent=19 // pred_check_branch
          %177 = sbr.rel (%p175) target = $region24
        $region23: #{swept_volume_head.1} parent=19 // pred_region
          %s178 = sand.u32 %s71, 1
          %s179 = scalar_lea.sflag [#allocation4], %s178
          %s180 = sand.u32 %s71, 1
          %s181 = smul.addr %s180, 128
          %s182 = scalar_lea.vmem [#allocation3], %s181
          %s183 = smul.u32 32, %s21
          %s185 = ssub.s32 2048, 2048
          %186 = vsyncadd %s179, %s185
          %s187 = smul.addr %s183, 2
          %s188 = sadd.s32 %s19, %s187
          %s189 = smul.addr %s188, 64
          %s190 = scalar_lea.hbm %s1, %s189
          %s191 = sshll.u32 %s182, 4
          %s192 = int_to_ptr.vmem [resolvable:$true] %s191
          %197 = dma.hbm_to_vmem [thread:$0]  %s190, 2048, %s192, %s179, 128, 64, 4
        $region24: #{swept_volume_head.1} parent=19 // pred_fallthru
          _
        // Predicated region
        $region25: #{swept_volume_head.1} parent=19 // pred_check
          %p198 = pneg %p107
        $region26: #{swept_volume_head.1} parent=19 // pred_check_branch
          %200 = sbr.rel (%p198) target = $region28
        $region27: #{swept_volume_head.1} parent=19 // pred_region
          %p201 = scmp.lt.s32.totalorder %s19, 1
          %s202 = scalar_select %p201, %s19, 1
          %s203 = smul.addr %s202, 8
          %s204 = scalar_lea.vmem %s2, %s203
        $region28: #{swept_volume_head.1} parent=19 // pred_fallthru
          _
      $region20: #{swept_volume_head.1} parent=5 // pred_fallthru
        _
      %p205 = scmp.le.s32.totalorder 1, %s12
      %p206 = scmp.lt.s32.totalorder %s12, 3
      %p207 = pnand %p205, %p206
      %p208 = pneg %p207
      // Predicated region
      $region29: #{swept_volume_head.1} parent=5 // pred_check
        _
      $region30: #{swept_volume_head.1} parent=5 // pred_check_branch
        %210 = sbr.rel (%p207) target = $region32
      $region31: #{swept_volume_head.1} parent=5 // pred_region
        %s211 = ssub.s32 %s12, 1
        %s212 = sand.u32 %s74, 1
        %s213 = scalar_lea.sflag [#allocation4], %s212
        %s214 = sand.u32 %s74, 1
        %s215 = smul.addr %s214, 128
        %s216 = scalar_lea.vmem [#allocation3], %s215
        // Predicated region
        $region33: #{swept_volume_head.1} parent=31 // pred_check
          %p217 = pneg %p87
        $region34: #{swept_volume_head.1} parent=31 // pred_check_branch
          %219 = sbr.rel (%p217) target = $region36
        $region35: #{swept_volume_head.1} parent=31 // pred_region
          %220 = dma.done %s213, 2048
        $region36: #{swept_volume_head.1} parent=31 // pred_fallthru
          _
        %s221 = smul.u32 2, %s23
        %s222 = smul.u32 2, %s24
        %p223 = scmp.lt.s32.totalorder %s221, 1
        %s224 = scalar_select %p223, %s221, 1
        %p225 = scmp.lt.s32.totalorder %s222, 1
        %s226 = scalar_select %p225, %s222, 1
        %s227 = smul.addr %s224, 2
        %s228 = sadd.s32 %s226, %s227
        %s229 = smul.addr %s228, 8
        %s230 = scalar_lea.vmem %s0, %s229
        %p231 = pneg %p59
        %p232 = pneg %p56
        %s233 = sand.u32 %s74, 1
        %s234 = scalar_lea.sflag [#allocation4], %s233
        %s235 = sand.u32 %s74, 1
        %s236 = smul.addr %s235, 128
        %s237 = scalar_lea.vmem [#allocation3], %s236
        %p238 = pneg %p87
        %p239 = pneg %p84
        %p240 = scmp.lt.s32.totalorder %s22, 1
        %s241 = scalar_select %p240, %s22, 1
        %s242 = smul.addr %s241, 8
        %s243 = scalar_lea.vmem %s2, %s242
        %p244 = pneg %p113
        %p245 = pneg %p110
        %p246 = pneg %p141
        %p247 = pneg %p138
        %s248 = sand.u32 %s128, 1
        %s249 = sand.u32 %s128, 1
        %s250 = smul.addr %s249, 16
        %s251 = scalar_lea.vmem [#allocation5], %s250
        %s252 = smul.u32 2, %s23
        %s253 = smul.u32 2, %s24
        %p254 = scmp.lt.s32.totalorder %s252, 1
        %s255 = scalar_select %p254, %s252, 1
        %p256 = scmp.lt.s32.totalorder %s253, 1
        %s257 = scalar_select %p256, %s253, 1
        %s258 = smul.addr %s255, 2
        %s259 = sadd.s32 %s257, %s258
        %s260 = smul.addr %s259, 8
        %s261 = scalar_lea.vmem %s0, %s260
        %s262 = smul.u32 2, %s23
        %s263 = smul.u32 2, %s24
        %s264 = smul.u32 32, %s24
        %p265 = scmp.lt.s32.totalorder %s22, 1
        %s266 = scalar_select %p265, %s22, 1
        %s267 = smul.addr %s266, 8
        %s268 = scalar_lea.vmem %s2, %s267
        %s269 = smul.u32 2, %s23
        %p271 = scmp.eq.s32.totalorder %s24, 0
        // Predicated region
        $region37: #{swept_volume_head.1} parent=31 // pred_check
          %p272 = pneg %p271
        $region38: #{swept_volume_head.1} parent=31 // pred_check_branch
          %274 = sbr.rel (%p272) target = $region40
        $region39: #{swept_volume_head.1} parent=31 // pred_region
          %v275 = vld [vmem:[%s268] sm:$0x1]
          %v276 = vlaneseq
          %v277 = vshrl.u32 %v276, 7
          %v278 = vsub.s32 0, %v277
          %v279 = vrot.slane %v275, %v278
          %280 = vst [vmem:[#allocation2] sm:$0xff] %v279
          %281 = vst [vmem:[#allocation2 + $0x8] sm:$0xff] %v279
        $region40: #{swept_volume_head.1} parent=31 // pred_fallthru
          _
        %v282 = vld [vmem:[#allocation2] sm:$0xff]
        %v283 = vld [vmem:[#allocation2 + $0x8] sm:$0xff]
        %v284 = vld [vmem:[%s261] sm:$0xff]
        %v285 = vld [vmem:[%s261 + $0x8] sm:$0xff]
        %v286 = vld [vmem:[%s261 + $0x10] sm:$0xff]
        %v287 = vld [vmem:[%s261 + $0x18] sm:$0xff]
        %v288 = vpack.c.bf16 %v286, %v284
        %v289 = vpack.c.bf16 %v287, %v285
        %v290 = vld [vmem:[%s216] sm:$0xf]
        %v291 = vld [vmem:[%s216 + $0x4] sm:$0xf]
        %v292 = vld [vmem:[%s216 + $0x8] sm:$0xf]
        %v293 = vld [vmem:[%s216 + $0xc] sm:$0xf]
        %v294 = vld [vmem:[%s216 + $0x10] sm:$0xf]
        %v295 = vld [vmem:[%s216 + $0x14] sm:$0xf]
        %v296 = vld [vmem:[%s216 + $0x18] sm:$0xf]
        %v297 = vld [vmem:[%s216 + $0x1c] sm:$0xf]
        %v298 = vld [vmem:[%s216 + $0x20] sm:$0xf]
        %v299 = vld [vmem:[%s216 + $0x24] sm:$0xf]
        %v300 = vld [vmem:[%s216 + $0x28] sm:$0xf]
        %v301 = vld [vmem:[%s216 + $0x2c] sm:$0xf]
        %v302 = vld [vmem:[%s216 + $0x30] sm:$0xf]
        %v303 = vld [vmem:[%s216 + $0x34] sm:$0xf]
        %v304 = vld [vmem:[%s216 + $0x38] sm:$0xf]
        %v305 = vld [vmem:[%s216 + $0x3c] sm:$0xf]
        %v306 = vld [vmem:[%s216 + $0x40] sm:$0xf]
        %v307 = vld [vmem:[%s216 + $0x44] sm:$0xf]
        %v308 = vld [vmem:[%s216 + $0x48] sm:$0xf]
        %v309 = vld [vmem:[%s216 + $0x4c] sm:$0xf]
        %v310 = vld [vmem:[%s216 + $0x50] sm:$0xf]
        %v311 = vld [vmem:[%s216 + $0x54] sm:$0xf]
        %v312 = vld [vmem:[%s216 + $0x58] sm:$0xf]
        %v313 = vld [vmem:[%s216 + $0x5c] sm:$0xf]
        %v314 = vld [vmem:[%s216 + $0x60] sm:$0xf]
        %v315 = vld [vmem:[%s216 + $0x64] sm:$0xf]
        %v316 = vld [vmem:[%s216 + $0x68] sm:$0xf]
        %v317 = vld [vmem:[%s216 + $0x6c] sm:$0xf]
        %v318 = vld [vmem:[%s216 + $0x70] sm:$0xf]
        %v319 = vld [vmem:[%s216 + $0x74] sm:$0xf]
        %v320 = vld [vmem:[%s216 + $0x78] sm:$0xf]
        %v321 = vld [vmem:[%s216 + $0x7c] sm:$0xf]
        %v354 = vunpack.c.l.b16 %v290
        %v355 = vunpack.c.l.b16 %v291
        %v356 = vunpack.c.l.b16 %v292
        %v357 = vunpack.c.l.b16 %v293
        %v358 = vunpack.c.l.b16 %v294
        %v359 = vunpack.c.l.b16 %v295
        %v360 = vunpack.c.l.b16 %v296
        %v361 = vunpack.c.l.b16 %v297
        %v362 = vunpack.c.l.b16 %v298
        %v363 = vunpack.c.l.b16 %v299
        %v364 = vunpack.c.l.b16 %v300
        %v365 = vunpack.c.l.b16 %v301
        %v366 = vunpack.c.l.b16 %v302
        %v367 = vunpack.c.l.b16 %v303
        %v368 = vunpack.c.l.b16 %v304
        %v369 = vunpack.c.l.b16 %v305
        %v370 = vunpack.c.l.b16 %v306
        %v371 = vunpack.c.l.b16 %v307
        %v372 = vunpack.c.l.b16 %v308
        %v373 = vunpack.c.l.b16 %v309
        %v374 = vunpack.c.l.b16 %v310
        %v375 = vunpack.c.l.b16 %v311
        %v376 = vunpack.c.l.b16 %v312
        %v377 = vunpack.c.l.b16 %v313
        %v378 = vunpack.c.l.b16 %v314
        %v379 = vunpack.c.l.b16 %v315
        %v380 = vunpack.c.l.b16 %v316
        %v381 = vunpack.c.l.b16 %v317
        %v382 = vunpack.c.l.b16 %v318
        %v383 = vunpack.c.l.b16 %v319
        %v384 = vunpack.c.l.b16 %v320
        %v385 = vunpack.c.l.b16 %v321
        %v386 = vpack.c.b16 %v355, %v354
        %v387 = vpack.c.b16 %v357, %v356
        %v388 = vpack.c.b16 %v359, %v358
        %v389 = vpack.c.b16 %v361, %v360
        %v390 = vpack.c.b16 %v363, %v362
        %v391 = vpack.c.b16 %v365, %v364
        %v392 = vpack.c.b16 %v367, %v366
        %v393 = vpack.c.b16 %v369, %v368
        %v394 = vpack.c.b16 %v371, %v370
        %v395 = vpack.c.b16 %v373, %v372
        %v396 = vpack.c.b16 %v375, %v374
        %v397 = vpack.c.b16 %v377, %v376
        %v398 = vpack.c.b16 %v379, %v378
        %v399 = vpack.c.b16 %v381, %v380
        %v400 = vpack.c.b16 %v383, %v382
        %v401 = vpack.c.b16 %v385, %v384
        %418 = vmatprep.subr.bf16.mxu0 0
        %419 = vmatpush1.bf16.msra.mxu0 %v386
        %420 = vmatprep.subr.bf16.mxu0 0
        %421 = vmatpush1.bf16.msra.mxu0 %v387
        %422 = vmatprep.subr.bf16.mxu0 0
        %423 = vmatpush1.bf16.msra.mxu0 %v388
        %424 = vmatprep.subr.bf16.mxu0 0
        %425 = vmatpush1.bf16.msra.mxu0 %v389
        %426 = vmatprep.subr.bf16.mxu0 0
        %427 = vmatpush1.bf16.msra.mxu0 %v390
        %428 = vmatprep.subr.bf16.mxu0 0
        %429 = vmatpush1.bf16.msra.mxu0 %v391
        %430 = vmatprep.subr.bf16.mxu0 0
        %431 = vmatpush1.bf16.msra.mxu0 %v392
        %432 = vmatprep.subr.bf16.mxu0 0
        %433 = vmatpush1.bf16.msra.mxu0 %v393
        %434 = vmatprep.subr.bf16.mxu0 0
        %435 = vmatpush1.bf16.msra.mxu0 %v394
        %436 = vmatprep.subr.bf16.mxu0 0
        %437 = vmatpush1.bf16.msra.mxu0 %v395
        %438 = vmatprep.subr.bf16.mxu0 0
        %439 = vmatpush1.bf16.msra.mxu0 %v396
        %440 = vmatprep.subr.bf16.mxu0 0
        %441 = vmatpush1.bf16.msra.mxu0 %v397
        %442 = vmatprep.subr.bf16.mxu0 0
        %443 = vmatpush1.bf16.msra.mxu0 %v398
        %444 = vmatprep.subr.bf16.mxu0 0
        %445 = vmatpush1.bf16.msra.mxu0 %v399
        %446 = vmatprep.subr.bf16.mxu0 0
        %447 = vmatpush1.bf16.msra.mxu0 %v400
        %448 = vmatprep.subr.bf16.mxu0 0
        %449 = vmatpush1.bf16.msra.mxu0 %v401
        %450 = vmatprep.mubr.bf16.mxu0 %v289
        %451 = vmatmul.mubr.bf16.gmra.mrb[0].mxu0 %v288
        %v452 = vpop.f32.mrb[0].mxu0
        %v453 = vadd.f32 0.0, %v452
        %v454 = vpop.f32.mrb[0].mxu0
        %v455 = vpop.f32.mrb[0].mxu0
        %v456 = vadd.f32 0.0, %v455
        %v457 = vpop.f32.mrb[0].mxu0
        %458 = vdwg.mxu0
        %v459 = vadd.f32 %v282, %v453
        %v460 = vadd.f32 %v283, %v456
        %461 = vst [vmem:[#allocation2] sm:$0xff] %v459
        %462 = vst [vmem:[#allocation2 + $0x8] sm:$0xff] %v460
        // Predicated region
        $region41: #{swept_volume_head.1} parent=31 // pred_check
          %p463 = pneg %p271
        $region42: #{swept_volume_head.1} parent=31 // pred_check_branch
          %465 = sbr.rel (%p463) target = $region44
        $region43: #{swept_volume_head.1} parent=31 // pred_region
          %v466 = vld [vmem:[#allocation2] sm:$0xff]
          %v467 = vld [vmem:[#allocation2 + $0x8] sm:$0xff]
          %v468 = vtanh.pop %v466
          %v469 = vtanh.pop %v467
          %v470 = vld [vmem:[%s268 + $0x1] sm:$0x1]
          %v471 = vlaneseq
          %v472 = vshrl.u32 %v471, 7
          %v473 = vsub.s32 0, %v472
          %v474 = vrot.slane %v470, %v473
          %v475 = vmul.f32 %v468, %v474
          %v476 = vmul.f32 %v469, %v474
          %v477 = vld [vmem:[%s268 + $0x2] sm:$0x1]
          %v478 = vlaneseq
          %v479 = vshrl.u32 %v478, 7
          %v480 = vsub.s32 0, %v479
          %v481 = vrot.slane %v477, %v480
          %v482 = vadd.f32 %v475, %v481
          %v483 = vadd.f32 %v476, %v481
          %484 = vst [vmem:[%s251] sm:$0xff] %v482
          %485 = vst [vmem:[%s251 + $0x8] sm:$0xff] %v483
        $region44: #{swept_volume_head.1} parent=31 // pred_fallthru
          _
        %s486 = sand.u32 %s128, 1
        %s487 = sand.u32 %s128, 1
        %s488 = smul.addr %s487, 16
        %s489 = scalar_lea.vmem [#allocation5], %s488
        // Predicated region
        $region45: #{swept_volume_head.1} parent=31 // pred_check
          %p490 = pneg %p138
        $region46: #{swept_volume_head.1} parent=31 // pred_check_branch
          %492 = sbr.rel (%p490) target = $region48
        $region47: #{swept_volume_head.1} parent=31 // pred_region
          %s493 = smul.u32 2, %s23
          %s494 = smul.addr %s493, 2
          %s495 = sadd.s32 %s22, %s494
          %s496 = smul.addr %s495, 8
          %s497 = scalar_lea.vmem %s3, %s496
          // Predicated region
          $region49: #{swept_volume_head.1} parent=47 // pred_check
            _
          $region50: #{swept_volume_head.1} parent=47 // pred_check_branch
            %499 = sbr.rel (0) target = $region52
          $region51: #{swept_volume_head.1} parent=47 // pred_region
            // Predicated region
            $region53: #{swept_volume_head.1} parent=51 // pred_check
              _
            $region54: #{swept_volume_head.1} parent=51 // pred_check_branch
              %501 = sbr.rel (0) target = $region56
            $region55: #{swept_volume_head.1} parent=51 // pred_region
              // Predicated region
              $region68: #{swept_volume_head.1} parent=55 // pred_check
                _
              $region69: #{swept_volume_head.1} parent=55 // pred_check_branch
                %518 = sbr.rel (0) target = $region71
              $region70: #{swept_volume_head.1} parent=55 // pred_region
                loop: start=0, step=1, limit=1
                $region72: #{swept_volume_head.1} parent=70 // loop_pre_header
                  _
                $region73: #{swept_volume_head.1} parent=70 // loop_header
                  %s520 = sphi 0, %s524
                  %p521 = scmp.ge.s32.totalorder %s520, 1
                  %s525 = sphi %s489, %s489
                  %s526 = sphi %s497, %s497
                $region74: #{swept_volume_head.1} parent=70 // loop_header_branch
                  %523 = sbr.rel (%p521) target = $region78
                $region75: #{swept_volume_head.1} parent=70 // loop_body
                  %v527 = vld [vmem:[%s525] sm:$0xff]
                  %528 = vst [vmem:[%s526] sm:$0xff] %v527
                  %v529 = vld [vmem:[%s525 + $0x8] sm:$0xff]
                  %530 = vst [vmem:[%s526 + $0x10] sm:$0xff] %v529
                $region76: #{swept_volume_head.1} parent=70 // loop_footer
                  %s524 = sadd.s32 1, %s520
                $region77: #{swept_volume_head.1} parent=70 // loop_footer_branch
                  %519 = sbr.rel target = $region73
                $region78: #{swept_volume_head.1} parent=70 // loop_exit
                  _
              $region71: #{swept_volume_head.1} parent=55 // pred_fallthru
                _
              // Predicated region
              $region79: #{swept_volume_head.1} parent=55 // pred_check
                _
              $region80: #{swept_volume_head.1} parent=55 // pred_check_branch
                %532 = sbr.rel target = $region82
              $region81: #{swept_volume_head.1} parent=55 // pred_region
                _
              $region82: #{swept_volume_head.1} parent=55 // pred_fallthru
                _
            $region56: #{swept_volume_head.1} parent=51 // pred_fallthru
              _
            // Predicated region
            $region57: #{swept_volume_head.1} parent=51 // pred_check
              _
            $region58: #{swept_volume_head.1} parent=51 // pred_check_branch
              %503 = sbr.rel target = $region60
            $region59: #{swept_volume_head.1} parent=51 // pred_region
              loop: start=0, step=1, limit=1
              $region61: #{swept_volume_head.1} parent=59 // loop_pre_header
                _
              $region62: #{swept_volume_head.1} parent=59 // loop_header
                %s506 = sphi 0, %s510
                %p507 = scmp.ge.s32.totalorder %s506, 1
                %s511 = sphi %s489, %s489
                %s512 = sphi %s497, %s497
              $region63: #{swept_volume_head.1} parent=59 // loop_header_branch
                %509 = sbr.rel (%p507) target = $region67
              $region64: #{swept_volume_head.1} parent=59 // loop_body
                %v513 = vld [vmem:[%s511] sm:$0xff]
                %514 = vst [vmem:[%s512] sm:$0xff] %v513
                %v515 = vld [vmem:[%s511 + $0x8] sm:$0xff]
                %516 = vst [vmem:[%s512 + $0x10] sm:$0xff] %v515
              $region65: #{swept_volume_head.1} parent=59 // loop_footer
                %s510 = sadd.s32 1, %s506
              $region66: #{swept_volume_head.1} parent=59 // loop_footer_branch
                %505 = sbr.rel target = $region62
              $region67: #{swept_volume_head.1} parent=59 // loop_exit
                _
            $region60: #{swept_volume_head.1} parent=51 // pred_fallthru
              _
          $region52: #{swept_volume_head.1} parent=47 // pred_fallthru
            _
          %533 = vnop
        $region48: #{swept_volume_head.1} parent=31 // pred_fallthru
          _
      $region32: #{swept_volume_head.1} parent=5 // pred_fallthru
        _
      %p534 = scmp.le.s32.totalorder 2, %s12
      // Predicated region
      $region83: #{swept_volume_head.1} parent=5 // pred_check
        %p535 = pneg %p534
      $region84: #{swept_volume_head.1} parent=5 // pred_check_branch
        %537 = sbr.rel (%p535) target = $region86
      $region85: #{swept_volume_head.1} parent=5 // pred_region
        %s538 = ssub.s32 %s12, 2
        // Predicated region
        $region87: #{swept_volume_head.1} parent=85 // pred_check
          %p539 = pneg %p144
        $region88: #{swept_volume_head.1} parent=85 // pred_check_branch
          %541 = sbr.rel (%p539) target = $region90
        $region89: #{swept_volume_head.1} parent=85 // pred_region
          %s542 = sand.u32 %s129, 1
          %s543 = sand.u32 %s129, 1
          %s544 = smul.addr %s543, 16
          %s545 = scalar_lea.vmem [#allocation5], %s544
        $region90: #{swept_volume_head.1} parent=85 // pred_fallthru
          _
      $region86: #{swept_volume_head.1} parent=5 // pred_fallthru
        _
    $region6: #{swept_volume_head.1} parent=1 // loop_footer
      %s16 = sadd.s32 1, %s12
    $region7: #{swept_volume_head.1} parent=1 // loop_footer_branch
      %11 = sbr.rel target = $region3
    $region8: #{swept_volume_head.1} parent=1 // loop_exit
      _
    %546 = vsyncpa [#allocation4], 1
    %s547 = scalar_lea.sflag [#allocation4], 1
    %548 = vsyncpa %s547, 1

</llo_original>
